<compile_context>
chip_gen: v7x
topology: tpu7x:2x2x1
jax: 0.10.0
libtpu: 0.0.40
codegen_flags: <defaults>
</compile_context>

<pallas_src>
import jax
import jax.numpy as jnp
from jax.experimental import pallas as pl
from jax.experimental.pallas import tpu as pltpu


def _interp_matrix(out_size: int, in_size: int) -> jnp.ndarray:
    """Row-stochastic (out_size, in_size) bilinear weight matrix, align_corners=True."""
    if out_size == 1:
        src = jnp.zeros((1,), dtype=jnp.float32)
    else:
        src = jnp.arange(out_size, dtype=jnp.float32) * (in_size - 1) / (out_size - 1)
    i0 = jnp.clip(jnp.floor(src).astype(jnp.int32), 0, in_size - 1)
    i1 = jnp.minimum(i0 + 1, in_size - 1)
    frac = src - i0.astype(jnp.float32)
    w = ((1.0 - frac)[:, None] * jax.nn.one_hot(i0, in_size, dtype=jnp.float32)
         + frac[:, None] * jax.nn.one_hot(i1, in_size, dtype=jnp.float32))
    return w


def _round_up(x: int, m: int) -> int:
    return ((x + m - 1) // m) * m


def _vmem_budget_bytes() -> int:
    """Generation-aware VMEM working-set budget (leaves headroom for compiler scratch)."""
    cap = 64 * 1024 * 1024  # conservative fallback: v7x has 64 MiB per TensorCore
    try:
        info = pltpu.get_tpu_info()
        cap = int(getattr(info, "vmem_capacity_bytes", cap)) or cap
    except Exception:
        pass
    return min(int(cap * 0.70), 100 * 1024 * 1024)


def _make_kernel(has_mask: bool, do_interp: bool, needs_row_mask: bool,
                 tb: int, b_rows: int, precision):
    """Kernel variants are selected at trace time (no dead refs / dead DMA)."""

    def kernel(*refs):
        refs = list(refs)
        kmat_ref = refs.pop(0) if do_interp else None
        if has_mask:
            pred_ref, target_ref, mask_ref, num_ref, den_ref = refs
        else:
            pred_ref, target_ref, num_ref = refs

        p = pred_ref[...].astype(jnp.float32)                  # (TB, Lin)
        if do_interp:
            # Combined bilinear interpolation: one lane-dense MXU matmul.
            p = jnp.dot(p, kmat_ref[...],
                        preferred_element_type=jnp.float32,
                        precision=precision)                   # (TB, L)

        d = p - target_ref[...].astype(jnp.float32)            # (TB, L)

        valid = None
        if needs_row_mask:
            # Zero rows of the boundary block that lie past the true batch size.
            # jnp.where (select) so OOB garbage / NaN cannot propagate.
            rows = (jax.lax.broadcasted_iota(jnp.int32, (tb, 1), 0)
                    + pl.program_id(0) * tb)
            valid = rows < b_rows
            d = jnp.where(valid, d, 0.0)

        if has_mask:
            m = mask_ref[...].astype(jnp.float32)               # bool -> 0/1
            if needs_row_mask:
                m = jnp.where(valid, m, 0.0)
            d = d * m
            den_ref[...] = jnp.sum(m, axis=0, keepdims=True)    # (1, L) partial
        num_ref[...] = jnp.sum(d * d, axis=0, keepdims=True)    # (1, L) partial

    return kernel


def mse_loss(pred, target, mask=None, interpolate=True,
             precision=jax.lax.Precision.HIGHEST):
    """Pallas equivalent of MSELoss.forward(pred, target, mask, interpolate).

    pred:   (N, C, Hp, Wp)   target: (N, C, Ht, Wt)
    mask:   optional boolean (N, C, Ht, Wt) — elementwise selection.
    """
    pred = jnp.asarray(pred)
    target = jnp.asarray(target)
    N, C, Hp, Wp = pred.shape
    Ht, Wt = target.shape[-2:]
    B = N * C
    L = Ht * Wt

    do_interp = bool(interpolate)
    if do_interp:
        Lin = Hp * Wp
        wh = _interp_matrix(Ht, Hp)
        ww = _interp_matrix(Wt, Wp)
        # kmat[i*Wp + j, h*Wt + w] = wh[h, i] * ww[w, j]
        kmat = jnp.kron(wh, ww).T.astype(jnp.float32)          # (Lin, L)
        kmat_bytes = Lin * L * 4
        if kmat_bytes > 4 * 1024 * 1024:
            # TODO(synk): factorized Wh @ X @ Ww^T path for very large spatial sizes.
            raise NotImplementedError(
                "combined interpolation operator > 4 MiB; factorized path not implemented")
    else:
        assert (Hp, Wp) == (Ht, Wt), "without interpolation, shapes must match"
        Lin = L
        kmat = None
        kmat_bytes = 0

    pred2 = pred.reshape(B, Lin)
    target2 = target.reshape(B, L)
    has_mask = mask is not None
    if has_mask:
        mask2 = jnp.asarray(mask)
        if mask2.dtype != jnp.bool_:
            mask2 = mask2 != 0          # enforce select (not weight) semantics
        mask2 = mask2.reshape(B, L)     # bool: 1 byte/elem, no extra HBM pass

    # --- tiny pad only when B < 8 (sublane tile); zero rows contribute 0 -----
    B_rows = B
    if B_rows < 8:
        extra = 8 - B_rows
        pred2 = jnp.pad(pred2, ((0, extra), (0, 0)))
        target2 = jnp.pad(target2, ((0, extra), (0, 0)))
        if has_mask:
            mask2 = jnp.pad(mask2, ((0, extra), (0, 0)))
        B_rows = 8

    # --- adaptive batch tile: ~2 MiB HBM per step, VMEM-budgeted, >=2 steps ---
    bytes_per_row_hbm = 4 * Lin + 4 * L + (L if has_mask else 0)
    TB_traffic = max(8, ((2 * 1024 * 1024) // bytes_per_row_hbm) // 8 * 8)

    vmem_budget = _vmem_budget_bytes()
    kmat_vmem = 2 * kmat_bytes                       # pipeline holds 2 buffers (re-DMA skipped)
    out_vmem = 2 * (2 if has_mask else 1) * L * 4    # double-buffered (1, L) partials
    vmem_per_row = 2 * bytes_per_row_hbm + 3 * 4 * L # dbl-buffered slabs + f32 temporaries
    avail = max(8 * vmem_per_row, vmem_budget - kmat_vmem - out_vmem - (2 << 20))
    TB_vmem = max(8, (avail // vmem_per_row) // 8 * 8)

    TB_split = _round_up(max(1, -(-B_rows // 2)), 8)  # >= 2 grid steps when possible (v7x)
    TB = max(8, min(TB_traffic, TB_vmem, TB_split, _round_up(B_rows, 8)))

    nb = -(-B_rows // TB)
    needs_row_mask = (nb * TB != B_rows)   # boundary block handled in-kernel, no jnp.pad

    in_specs = []
    inputs = []
    if do_interp:
        # Constant index_map -> the pipeline DMAs kmat once and reuses it.
        in_specs.append(pl.BlockSpec((Lin, L), lambda b: (0, 0)))
        inputs.append(kmat)
    in_specs.append(pl.BlockSpec((TB, Lin), lambda b: (b, 0)))      # pred slab
    inputs.append(pred2)
    in_specs.append(pl.BlockSpec((TB, L), lambda b: (b, 0)))        # target slab
    inputs.append(target2)
    if has_mask:
        in_specs.append(pl.BlockSpec((TB, L), lambda b: (b, 0)))    # bool mask slab
        inputs.append(mask2)

    partial_spec = pl.BlockSpec((1, L), lambda b: (b, 0))           # lane-dense partial rows
    partial_shape = jax.ShapeDtypeStruct((nb, L), jnp.float32)
    if has_mask:
        out_shape = (partial_shape, partial_shape)
        out_specs = (partial_spec, partial_spec)
    else:
        out_shape = partial_shape
        out_specs = partial_spec

    result = pl.pallas_call(
        _make_kernel(has_mask, do_interp, needs_row_mask, TB, B_rows, precision),
        out_shape=out_shape,
        grid_spec=pltpu.PrefetchScalarGridSpec(
            num_scalar_prefetch=0,
            grid=(nb,),
            in_specs=in_specs,
            out_specs=out_specs,
        ),
        compiler_params=pltpu.CompilerParams(
            # each grid step writes its own partial row -> fully parallel
            dimension_semantics=("parallel",),
            vmem_limit_bytes=int(vmem_budget)),
    )(*inputs)

    if has_mask:
        num, den = result
        # All-zero mask gives 0/0 = nan, matching torch's mean of an empty selection.
        return jnp.sum(num) / jnp.sum(den)
    num = result
    return jnp.sum(num) / jnp.float32(B * L)


if __name__ == "__main__":
    key = jax.random.PRNGKey(0)
    k1, k2, k3 = jax.random.split(key, 3)

    N, C = 2, 4
    Hp, Wp = 8, 8        # pred spatial size (pre-interpolation)
    Ht, Wt = 16, 16      # target spatial size

    pred = jax.random.normal(k1, (N, C, Hp, Wp), dtype=jnp.float32)
    target = jax.random.normal(k2, (N, C, Ht, Wt), dtype=jnp.float32)
    mask = jax.random.bernoulli(k3, 0.7, (N, C, Ht, Wt))

    # pure-JAX reference using the same interpolation weights
    wh = _interp_matrix(Ht, Hp)
    ww = _interp_matrix(Wt, Wp)
    interp_ref = jnp.einsum("hi,ncij,wj->nchw", wh, pred, ww,
                            precision=jax.lax.Precision.HIGHEST)

    # no-mask path
    loss = mse_loss(pred, target, mask=None, interpolate=True)
    jax.block_until_ready(loss)
    ref = jnp.mean((interp_ref - target) ** 2)
    assert jnp.allclose(loss, ref, rtol=1e-4, atol=1e-6), (loss, ref)

    # masked path (bool mask passed straight through, no wrapper cast)
    loss_m = mse_loss(pred, target, mask=mask, interpolate=True)
    jax.block_until_ready(loss_m)
    sq = (interp_ref - target) ** 2
    ref_m = jnp.sum(sq * mask) / jnp.sum(mask)
    assert jnp.allclose(loss_m, ref_m, rtol=1e-4, atol=1e-6), (loss_m, ref_m)

    # ragged batch: B = 15 exercises the cdiv grid + in-kernel row masking (no jnp.pad)
    N2, C2 = 3, 5
    p2 = jax.random.normal(k1, (N2, C2, Hp, Wp), dtype=jnp.float32)
    t2 = jax.random.normal(k2, (N2, C2, Ht, Wt), dtype=jnp.float32)
    m2 = jax.random.bernoulli(k3, 0.5, (N2, C2, Ht, Wt))
    interp2 = jnp.einsum("hi,ncij,wj->nchw", wh, p2, ww,
                         precision=jax.lax.Precision.HIGHEST)
    l2u = mse_loss(p2, t2, mask=None, interpolate=True)
    jax.block_until_ready(l2u)
    r2u = jnp.mean((interp2 - t2) ** 2)
    assert jnp.allclose(l2u, r2u, rtol=1e-4, atol=1e-6), (l2u, r2u)
    l2m = mse_loss(p2, t2, mask=m2, interpolate=True)
    jax.block_until_ready(l2m)
    r2m = jnp.sum(((interp2 - t2) ** 2) * m2) / jnp.sum(m2)
    assert jnp.allclose(l2m, r2m, rtol=1e-4, atol=1e-6), (l2m, r2m)

    # no-interpolation path (shapes already match)
    l3 = mse_loss(target * 0.9, target, mask=None, interpolate=False)
    jax.block_until_ready(l3)
    r3 = jnp.mean((target * 0.9 - target) ** 2)
    assert jnp.allclose(l3, r3, rtol=1e-4, atol=1e-6), (l3, r3)

    print("KERNEL_OK")
</pallas_src>

<mosaic_0001>
module attributes {stable_mosaic.version = 11 : i64} {
  func.func @kernel(%arg0: i32, %arg1: memref<64x256xf32, #tpu.memory_space<vmem>>, %arg2: memref<8x64xf32, #tpu.memory_space<vmem>>, %arg3: memref<8x256xf32, #tpu.memory_space<vmem>>, %arg4: memref<1x256xf32, #tpu.memory_space<vmem>>) attributes {dimension_semantics = [#tpu.dimension_semantics<parallel>], iteration_bounds = array<i64: 1>, scalar_prefetch = 0 : i64, scratch_operands = 0 : i64, tpu.core_type = #tpu.core_type<tc>, window_params = [{pipeline_mode = #tpu.pipeline_mode<synchronous>, transform_indices = @transform_0, window_bounds = array<i64: 64, 256>}, {transform_indices = @transform_1, window_bounds = array<i64: 8, 64>}, {transform_indices = @transform_2, window_bounds = array<i64: 8, 256>}, {transform_indices = @transform_3, window_bounds = array<i64: 1, 256>}]} {
    %c0 = arith.constant 0 : index
    %c0_0 = arith.constant 0 : index
    %0 = vector.load %arg2[%c0, %c0_0] : memref<8x64xf32, #tpu.memory_space<vmem>>, vector<8x64xf32>
    %c0_1 = arith.constant 0 : index
    %c0_2 = arith.constant 0 : index
    %1 = vector.load %arg1[%c0_1, %c0_2] : memref<64x256xf32, #tpu.memory_space<vmem>>, vector<64x256xf32>
    %cst = arith.constant dense<0.000000e+00> : vector<8x256xf32>
    %2 = tpu.matmul %0, %1, %cst {dimension_numbers = #tpu.dot_dimension_numbers<[1], [0], [0], [1], [0, 0, 1, 1], [], []>, precision = #tpu.contract_precision<fp32>} : vector<8x64xf32>, vector<64x256xf32>, vector<8x256xf32> -> vector<8x256xf32>
    %c0_3 = arith.constant 0 : index
    %c0_4 = arith.constant 0 : index
    %3 = vector.load %arg3[%c0_3, %c0_4] : memref<8x256xf32, #tpu.memory_space<vmem>>, vector<8x256xf32>
    %4 = arith.subf %2, %3 : vector<8x256xf32>
    %5 = arith.mulf %4, %4 : vector<8x256xf32>
    %cst_5 = arith.constant dense<0.000000e+00> : vector<256xf32>
    %6 = vector.multi_reduction <add>, %5, %cst_5 [0] : vector<8x256xf32> to vector<256xf32>
    %7 = vector.shape_cast %6 : vector<256xf32> to vector<1x256xf32>
    %c0_6 = arith.constant 0 : index
    %c0_7 = arith.constant 0 : index
    %8 = vector.load %arg4[%c0_6, %c0_7] : memref<1x256xf32, #tpu.memory_space<vmem>>, vector<1x256xf32>
    tpu.vector_store %arg4[%c0_6, %c0_7], %7 {strides = array<i32>} : memref<1x256xf32, #tpu.memory_space<vmem>>, vector<1x256xf32>,
    return
  }
  func.func @transform_0(%arg0: i32) -> (i32, i32) {
    %c0_i32 = arith.constant 0 : i32
    %c0_i32_0 = arith.constant 0 : i32
    %c0_i32_1 = arith.constant 0 : i32
    return %c0_i32, %c0_i32_0 : i32, i32
  }
  func.func @transform_1(%arg0: i32) -> (i32, i32) {
    %c0_i32 = arith.constant 0 : i32
    %c0_i32_0 = arith.constant 0 : i32
    return %arg0, %c0_i32 : i32, i32
  }
  func.func @transform_2(%arg0: i32) -> (i32, i32) {
    %c0_i32 = arith.constant 0 : i32
    %c0_i32_0 = arith.constant 0 : i32
    return %arg0, %c0_i32 : i32, i32
  }
  func.func @transform_3(%arg0: i32) -> (i32, i32) {
    %c0_i32 = arith.constant 0 : i32
    %c0_i32_0 = arith.constant 0 : i32
    return %arg0, %c0_i32 : i32, i32
  }
}

</mosaic_0001>

<llo_original>
// kernel: tpu_custom_call.1
$region0: #{tpu_custom_call.1}
  #allocation0 [shape = 'u32[]', space=smem, size = 0x4, offset = 0x4, fixed_abs, tag = 'smem constant byte address 0x4 - core index']
  #allocation1 [shape = 'u32[144,128]{1,0:T(1,128)}', space=vmem, size = 0x12000, scoped, tag = 'internal scratch']
  %s0 = inlined_call_operand.hbm [shape: f32[64,256], index: 0, kind: input, shape index: {}]
  %s1 = inlined_call_operand.hbm [shape: f32[8,64], index: 1, kind: input, shape index: {}]
  %s2 = inlined_call_operand.hbm [shape: f32[8,256], index: 2, kind: input, shape index: {}]
  %s3 = inlined_call_operand.hbm [shape: f32[1,256], index: 3, kind: output, shape index: {}]
  %s4 = sld [smem:[#allocation0]]
  $region34: #{tpu_custom_call.1} parent=0
    _
  %s6 = ssub.s32 1, %s4
  %s7 = scalar_select 0, %s6, %s4
  $region1: #{tpu_custom_call.1} parent=0
    #allocation2 [shape = 'u8[65536]{0}', space=vmem, size = 0x10000, scoped, tag = 'input window, operand 0, single buffered']
    #allocation3 [shape = 's32[1]{0}', space=sflag, size = 0x4, scoped, tag = 'scoped memory for tpu_custom_call.1']
    #allocation4 [shape = 's32[1]{0}', space=sflag, size = 0x4, scoped, tag = 'scoped memory for tpu_custom_call.1']
    #allocation5 [shape = 'u8[4096]{0}', space=vmem, size = 0x1000, scoped, tag = 'input window, operand 1, single buffered']
    #allocation6 [shape = 's32[1]{0}', space=sflag, size = 0x4, scoped, tag = 'scoped memory for tpu_custom_call.1']
    #allocation7 [shape = 'u8[8192]{0}', space=vmem, size = 0x2000, scoped, tag = 'input window, operand 2, single buffered']
    #allocation8 [shape = 'u8[1024]{0}', space=vmem, size = 0x400, scoped, tag = 'output window, operand 0, single buffered']
    %8 = vsyncpa [#allocation3], 0
    %9 = vsyncpa [#allocation6], 0
    %10 = vsyncpa [#allocation4], 0
    // Predicated region
    $region2: #{tpu_custom_call.1} parent=1 // pred_check
      _
    $region3: #{tpu_custom_call.1} parent=1 // pred_check_branch
      %12 = sbr.rel (0) target = $region5
    $region4: #{tpu_custom_call.1} parent=1 // pred_region
      %s14 = ssub.s32 2048, 2048
      %15 = vsyncadd [#allocation3], %s14
      %s16 = sshll.u32 [#allocation2], 4
      %s17 = int_to_ptr.vmem [resolvable:$true] %s16
      %22 = dma.hbm_to_vmem [thread:$0]  %s0, 2048, %s17, [#allocation3], 256, 256, 16
    $region5: #{tpu_custom_call.1} parent=1 // pred_fallthru
      _
    // Predicated region
    $region6: #{tpu_custom_call.1} parent=1 // pred_check
      _
    $region7: #{tpu_custom_call.1} parent=1 // pred_check_branch
      %24 = sbr.rel (0) target = $region9
    $region8: #{tpu_custom_call.1} parent=1 // pred_region
      %s26 = ssub.s32 128, 128
      %27 = vsyncadd [#allocation6], %s26
      %s29 = sshll.u32 [#allocation5], 4
      %s30 = int_to_ptr.vmem [resolvable:$true] %s29
      %32 = dma.hbm_to_vmem [thread:$0]  %s1, 128, %s30, [#allocation6]
    $region9: #{tpu_custom_call.1} parent=1 // pred_fallthru
      _
    // Predicated region
    $region10: #{tpu_custom_call.1} parent=1 // pred_check
      _
    $region11: #{tpu_custom_call.1} parent=1 // pred_check_branch
      %34 = sbr.rel (0) target = $region13
    $region12: #{tpu_custom_call.1} parent=1 // pred_region
      %s36 = ssub.s32 256, 256
      %37 = vsyncadd [#allocation6], %s36
      %s39 = sshll.u32 [#allocation7], 4
      %s40 = int_to_ptr.vmem [resolvable:$true] %s39
      %42 = dma.hbm_to_vmem [thread:$0]  %s2, 256, %s40, [#allocation6]
    $region13: #{tpu_custom_call.1} parent=1 // pred_fallthru
      _
    // Predicated region
    $region14: #{tpu_custom_call.1} parent=1 // pred_check
      _
    $region15: #{tpu_custom_call.1} parent=1 // pred_check_branch
      %44 = sbr.rel (0) target = $region17
    $region16: #{tpu_custom_call.1} parent=1 // pred_region
      %45 = dma.done [#allocation3], 2048
    $region17: #{tpu_custom_call.1} parent=1 // pred_fallthru
      _
    // Predicated region
    $region18: #{tpu_custom_call.1} parent=1 // pred_check
      _
    $region19: #{tpu_custom_call.1} parent=1 // pred_check_branch
      %47 = sbr.rel (0) target = $region21
    $region20: #{tpu_custom_call.1} parent=1 // pred_region
      %48 = dma.done [#allocation6], 128
    $region21: #{tpu_custom_call.1} parent=1 // pred_fallthru
      _
    // Predicated region
    $region22: #{tpu_custom_call.1} parent=1 // pred_check
      _
    $region23: #{tpu_custom_call.1} parent=1 // pred_check_branch
      %50 = sbr.rel (0) target = $region25
    $region24: #{tpu_custom_call.1} parent=1 // pred_region
      %51 = dma.done [#allocation6], 256
    $region25: #{tpu_custom_call.1} parent=1 // pred_fallthru
      _
    %v52 = vld [vmem:[#allocation5] sm:$0xff]
    %v53 = vld [vmem:[#allocation2] sm:$0xff]
    %v54 = vld [vmem:[#allocation2 + $0x8] sm:$0xff]
    %v55 = vld [vmem:[#allocation2 + $0x10] sm:$0xff]
    %v56 = vld [vmem:[#allocation2 + $0x18] sm:$0xff]
    %v57 = vld [vmem:[#allocation2 + $0x20] sm:$0xff]
    %v58 = vld [vmem:[#allocation2 + $0x28] sm:$0xff]
    %v59 = vld [vmem:[#allocation2 + $0x30] sm:$0xff]
    %v60 = vld [vmem:[#allocation2 + $0x38] sm:$0xff]
    %v61 = vld [vmem:[#allocation2 + $0x40] sm:$0xff]
    %v62 = vld [vmem:[#allocation2 + $0x48] sm:$0xff]
    %v63 = vld [vmem:[#allocation2 + $0x50] sm:$0xff]
    %v64 = vld [vmem:[#allocation2 + $0x58] sm:$0xff]
    %v65 = vld [vmem:[#allocation2 + $0x60] sm:$0xff]
    %v66 = vld [vmem:[#allocation2 + $0x68] sm:$0xff]
    %v67 = vld [vmem:[#allocation2 + $0x70] sm:$0xff]
    %v68 = vld [vmem:[#allocation2 + $0x78] sm:$0xff]
    %vm69 = vcmask 523264
    %v71 = vsel %vm69, %v52, 0
    %v73 = vand.u32 %v54, 4294901760
    %74 = vmatprep.subr.mxu0 %v73
    %v75 = vand.u32 %v53, 4294901760
    %76 = vmatpush1.msra.mxu0 %v75
    %v77 = vand.u32 %v56, 4294901760
    %78 = vmatprep.subr.mxu0 %v77
    %v79 = vand.u32 %v55, 4294901760
    %80 = vmatpush1.msra.mxu0 %v79
    %v81 = vand.u32 %v58, 4294901760
    %82 = vmatprep.subr.mxu0 %v81
    %v83 = vand.u32 %v57, 4294901760
    %84 = vmatpush1.msra.mxu0 %v83
    %v85 = vand.u32 %v60, 4294901760
    %86 = vmatprep.subr.mxu0 %v85
    %v87 = vand.u32 %v59, 4294901760
    %88 = vmatpush1.msra.mxu0 %v87
    %v89 = vand.u32 %v62, 4294901760
    %90 = vmatprep.subr.mxu0 %v89
    %v91 = vand.u32 %v61, 4294901760
    %92 = vmatpush1.msra.mxu0 %v91
    %v93 = vand.u32 %v64, 4294901760
    %94 = vmatprep.subr.mxu0 %v93
    %v95 = vand.u32 %v63, 4294901760
    %96 = vmatpush1.msra.mxu0 %v95
    %v97 = vand.u32 %v66, 4294901760
    %98 = vmatprep.subr.mxu0 %v97
    %v99 = vand.u32 %v65, 4294901760
    %100 = vmatpush1.msra.mxu0 %v99
    %v101 = vand.u32 %v68, 4294901760
    %102 = vmatprep.subr.mxu0 %v101
    %v103 = vand.u32 %v67, 4294901760
    %104 = vmatpush1.msra.mxu0 %v103
    %105 = vmatprep.subr.mxu0 0.0
    %106 = vmatpush1.msra.mxu0 0.0
    %107 = vmatprep.subr.mxu0 0.0
    %108 = vmatpush1.msra.mxu0 0.0
    %109 = vmatprep.subr.mxu0 0.0
    %110 = vmatpush1.msra.mxu0 0.0
    %111 = vmatprep.subr.mxu0 0.0
    %112 = vmatpush1.msra.mxu0 0.0
    %113 = vmatprep.subr.mxu0 0.0
    %114 = vmatpush1.msra.mxu0 0.0
    %115 = vmatprep.subr.mxu0 0.0
    %116 = vmatpush1.msra.mxu0 0.0
    %117 = vmatprep.subr.mxu0 0.0
    %118 = vmatpush1.msra.mxu0 0.0
    %119 = vmatprep.subr.mxu0 0.0
    %120 = vmatpush1.msra.mxu0 0.0
    %121 = vmatprep.subr.mxu0 0.0
    %122 = vmatpush1.msra.mxu0 0.0
    %123 = vmatprep.subr.mxu0 0.0
    %124 = vmatpush1.msra.mxu0 0.0
    %125 = vmatprep.subr.mxu0 0.0
    %126 = vmatpush1.msra.mxu0 0.0
    %127 = vmatprep.subr.mxu0 0.0
    %128 = vmatpush1.msra.mxu0 0.0
    %129 = vmatprep.subr.mxu0 0.0
    %130 = vmatpush1.msra.mxu0 0.0
    %131 = vmatprep.subr.mxu0 0.0
    %132 = vmatpush1.msra.mxu0 0.0
    %133 = vmatprep.subr.mxu0 0.0
    %134 = vmatpush1.msra.mxu0 0.0
    %135 = vmatprep.subr.mxu0 0.0
    %136 = vmatpush1.msra.mxu0 0.0
    %137 = vmatprep.subr.mxu0 0.0
    %138 = vmatpush1.msra.mxu0 0.0
    %139 = vmatprep.subr.mxu0 0.0
    %140 = vmatpush1.msra.mxu0 0.0
    %141 = vmatprep.subr.mxu0 0.0
    %142 = vmatpush1.msra.mxu0 0.0
    %143 = vmatprep.subr.mxu0 0.0
    %144 = vmatpush1.msra.mxu0 0.0
    %145 = vmatprep.subr.mxu0 0.0
    %146 = vmatpush1.msra.mxu0 0.0
    %147 = vmatprep.subr.mxu0 0.0
    %148 = vmatpush1.msra.mxu0 0.0
    %149 = vmatprep.subr.mxu0 0.0
    %150 = vmatpush1.msra.mxu0 0.0
    %151 = vmatprep.subr.mxu0 0.0
    %152 = vmatpush1.msra.mxu0 0.0
    %153 = vmatprep.mubr.f32.mxu0 0.0
    %v154 = vand.u32 %v71, 4294901760
    %v155 = vsub.f32 %v71, %v154
    %v156 = vand.u32 %v155, 4294901760
    %v157 = vsub.f32 %v155, %v156
    %v158 = vand.u32 %v157, 4294901760
    %159 = vmatmul.mubr.f32.gmra.mrb[0].mxu0 %v158
    %v160 = vpop.f32.mrb[0].mxu0
    %v161 = vadd.f32 0.0, %v160
    %v162 = vpop.f32.mrb[0].mxu0
    %v163 = vadd.f32 0.0, %v162
    %164 = vdwg.mxu0
    %v165 = vand.u32 %v54, 4294901760
    %v166 = vsub.f32 %v54, %v165
    %v167 = vand.u32 %v166, 4294901760
    %v168 = vsub.f32 %v166, %v167
    %v169 = vand.u32 %v168, 4294901760
    %170 = vmatprep.subr.mxu0 %v169
    %v171 = vand.u32 %v53, 4294901760
    %v172 = vsub.f32 %v53, %v171
    %v173 = vand.u32 %v172, 4294901760
    %v174 = vsub.f32 %v172, %v173
    %v175 = vand.u32 %v174, 4294901760
    %176 = vmatpush1.msra.mxu0 %v175
    %v177 = vand.u32 %v56, 4294901760
    %v178 = vsub.f32 %v56, %v177
    %v179 = vand.u32 %v178, 4294901760
    %v180 = vsub.f32 %v178, %v179
    %v181 = vand.u32 %v180, 4294901760
    %182 = vmatprep.subr.mxu0 %v181
    %v183 = vand.u32 %v55, 4294901760
    %v184 = vsub.f32 %v55, %v183
    %v185 = vand.u32 %v184, 4294901760
    %v186 = vsub.f32 %v184, %v185
    %v187 = vand.u32 %v186, 4294901760
    %188 = vmatpush1.msra.mxu0 %v187
    %v189 = vand.u32 %v58, 4294901760
    %v190 = vsub.f32 %v58, %v189
    %v191 = vand.u32 %v190, 4294901760
    %v192 = vsub.f32 %v190, %v191
    %v193 = vand.u32 %v192, 4294901760
    %194 = vmatprep.subr.mxu0 %v193
    %v195 = vand.u32 %v57, 4294901760
    %v196 = vsub.f32 %v57, %v195
    %v197 = vand.u32 %v196, 4294901760
    %v198 = vsub.f32 %v196, %v197
    %v199 = vand.u32 %v198, 4294901760
    %200 = vmatpush1.msra.mxu0 %v199
    %v201 = vand.u32 %v60, 4294901760
    %v202 = vsub.f32 %v60, %v201
    %v203 = vand.u32 %v202, 4294901760
    %v204 = vsub.f32 %v202, %v203
    %v205 = vand.u32 %v204, 4294901760
    %206 = vmatprep.subr.mxu0 %v205
    %v207 = vand.u32 %v59, 4294901760
    %v208 = vsub.f32 %v59, %v207
    %v209 = vand.u32 %v208, 4294901760
    %v210 = vsub.f32 %v208, %v209
    %v211 = vand.u32 %v210, 4294901760
    %212 = vmatpush1.msra.mxu0 %v211
    %v213 = vand.u32 %v62, 4294901760
    %v214 = vsub.f32 %v62, %v213
    %v215 = vand.u32 %v214, 4294901760
    %v216 = vsub.f32 %v214, %v215
    %v217 = vand.u32 %v216, 4294901760
    %218 = vmatprep.subr.mxu0 %v217
    %v219 = vand.u32 %v61, 4294901760
    %v220 = vsub.f32 %v61, %v219
    %v221 = vand.u32 %v220, 4294901760
    %v222 = vsub.f32 %v220, %v221
    %v223 = vand.u32 %v222, 4294901760
    %224 = vmatpush1.msra.mxu0 %v223
    %v225 = vand.u32 %v64, 4294901760
    %v226 = vsub.f32 %v64, %v225
    %v227 = vand.u32 %v226, 4294901760
    %v228 = vsub.f32 %v226, %v227
    %v229 = vand.u32 %v228, 4294901760
    %230 = vmatprep.subr.mxu0 %v229
    %v231 = vand.u32 %v63, 4294901760
    %v232 = vsub.f32 %v63, %v231
    %v233 = vand.u32 %v232, 4294901760
    %v234 = vsub.f32 %v232, %v233
    %v235 = vand.u32 %v234, 4294901760
    %236 = vmatpush1.msra.mxu0 %v235
    %v237 = vand.u32 %v66, 4294901760
    %v238 = vsub.f32 %v66, %v237
    %v239 = vand.u32 %v238, 4294901760
    %v240 = vsub.f32 %v238, %v239
    %v241 = vand.u32 %v240, 4294901760
    %242 = vmatprep.subr.mxu0 %v241
    %v243 = vand.u32 %v65, 4294901760
    %v244 = vsub.f32 %v65, %v243
    %v245 = vand.u32 %v244, 4294901760
    %v246 = vsub.f32 %v244, %v245
    %v247 = vand.u32 %v246, 4294901760
    %248 = vmatpush1.msra.mxu0 %v247
    %v249 = vand.u32 %v68, 4294901760
    %v250 = vsub.f32 %v68, %v249
    %v251 = vand.u32 %v250, 4294901760
    %v252 = vsub.f32 %v250, %v251
    %v253 = vand.u32 %v252, 4294901760
    %254 = vmatprep.subr.mxu0 %v253
    %v255 = vand.u32 %v67, 4294901760
    %v256 = vsub.f32 %v67, %v255
    %v257 = vand.u32 %v256, 4294901760
    %v258 = vsub.f32 %v256, %v257
    %v259 = vand.u32 %v258, 4294901760
    %260 = vmatpush1.msra.mxu0 %v259
    %261 = vmatprep.subr.mxu0 0.0
    %262 = vmatpush1.msra.mxu0 0.0
    %263 = vmatprep.subr.mxu0 0.0
    %264 = vmatpush1.msra.mxu0 0.0
    %265 = vmatprep.subr.mxu0 0.0
    %266 = vmatpush1.msra.mxu0 0.0
    %267 = vmatprep.subr.mxu0 0.0
    %268 = vmatpush1.msra.mxu0 0.0
    %269 = vmatprep.subr.mxu0 0.0
    %270 = vmatpush1.msra.mxu0 0.0
    %271 = vmatprep.subr.mxu0 0.0
    %272 = vmatpush1.msra.mxu0 0.0
    %273 = vmatprep.subr.mxu0 0.0
    %274 = vmatpush1.msra.mxu0 0.0
    %275 = vmatprep.subr.mxu0 0.0
    %276 = vmatpush1.msra.mxu0 0.0
    %277 = vmatprep.subr.mxu0 0.0
    %278 = vmatpush1.msra.mxu0 0.0
    %279 = vmatprep.subr.mxu0 0.0
    %280 = vmatpush1.msra.mxu0 0.0
    %281 = vmatprep.subr.mxu0 0.0
    %282 = vmatpush1.msra.mxu0 0.0
    %283 = vmatprep.subr.mxu0 0.0
    %284 = vmatpush1.msra.mxu0 0.0
    %285 = vmatprep.subr.mxu0 0.0
    %286 = vmatpush1.msra.mxu0 0.0
    %287 = vmatprep.subr.mxu0 0.0
    %288 = vmatpush1.msra.mxu0 0.0
    %289 = vmatprep.subr.mxu0 0.0
    %290 = vmatpush1.msra.mxu0 0.0
    %291 = vmatprep.subr.mxu0 0.0
    %292 = vmatpush1.msra.mxu0 0.0
    %293 = vmatprep.subr.mxu0 0.0
    %294 = vmatpush1.msra.mxu0 0.0
    %295 = vmatprep.subr.mxu0 0.0
    %296 = vmatpush1.msra.mxu0 0.0
    %297 = vmatprep.subr.mxu0 0.0
    %298 = vmatpush1.msra.mxu0 0.0
    %299 = vmatprep.subr.mxu0 0.0
    %300 = vmatpush1.msra.mxu0 0.0
    %301 = vmatprep.subr.mxu0 0.0
    %302 = vmatpush1.msra.mxu0 0.0
    %303 = vmatprep.subr.mxu0 0.0
    %304 = vmatpush1.msra.mxu0 0.0
    %305 = vmatprep.subr.mxu0 0.0
    %306 = vmatpush1.msra.mxu0 0.0
    %307 = vmatprep.subr.mxu0 0.0
    %308 = vmatpush1.msra.mxu0 0.0
    %309 = vmatprep.mubr.f32.mxu0 0.0
    %v310 = vand.u32 %v71, 4294901760
    %311 = vmatmul.mubr.f32.gmra.mrb[0].mxu0 %v310
    %v312 = vpop.f32.mrb[0].mxu0
    %v313 = vadd.f32 %v161, %v312
    %v314 = vpop.f32.mrb[0].mxu0
    %v315 = vadd.f32 %v163, %v314
    %316 = vdwg.mxu0
    %v317 = vand.u32 %v54, 4294901760
    %v318 = vsub.f32 %v54, %v317
    %319 = vmatprep.subr.mxu0 %v318
    %v320 = vand.u32 %v53, 4294901760
    %v321 = vsub.f32 %v53, %v320
    %322 = vmatpush1.msra.mxu0 %v321
    %v323 = vand.u32 %v56, 4294901760
    %v324 = vsub.f32 %v56, %v323
    %325 = vmatprep.subr.mxu0 %v324
    %v326 = vand.u32 %v55, 4294901760
    %v327 = vsub.f32 %v55, %v326
    %328 = vmatpush1.msra.mxu0 %v327
    %v329 = vand.u32 %v58, 4294901760
    %v330 = vsub.f32 %v58, %v329
    %331 = vmatprep.subr.mxu0 %v330
    %v332 = vand.u32 %v57, 4294901760
    %v333 = vsub.f32 %v57, %v332
    %334 = vmatpush1.msra.mxu0 %v333
    %v335 = vand.u32 %v60, 4294901760
    %v336 = vsub.f32 %v60, %v335
    %337 = vmatprep.subr.mxu0 %v336
    %v338 = vand.u32 %v59, 4294901760
    %v339 = vsub.f32 %v59, %v338
    %340 = vmatpush1.msra.mxu0 %v339
    %v341 = vand.u32 %v62, 4294901760
    %v342 = vsub.f32 %v62, %v341
    %343 = vmatprep.subr.mxu0 %v342
    %v344 = vand.u32 %v61, 4294901760
    %v345 = vsub.f32 %v61, %v344
    %346 = vmatpush1.msra.mxu0 %v345
    %v347 = vand.u32 %v64, 4294901760
    %v348 = vsub.f32 %v64, %v347
    %349 = vmatprep.subr.mxu0 %v348
    %v350 = vand.u32 %v63, 4294901760
    %v351 = vsub.f32 %v63, %v350
    %352 = vmatpush1.msra.mxu0 %v351
    %v353 = vand.u32 %v66, 4294901760
    %v354 = vsub.f32 %v66, %v353
    %355 = vmatprep.subr.mxu0 %v354
    %v356 = vand.u32 %v65, 4294901760
    %v357 = vsub.f32 %v65, %v356
    %358 = vmatpush1.msra.mxu0 %v357
    %v359 = vand.u32 %v68, 4294901760
    %v360 = vsub.f32 %v68, %v359
    %361 = vmatprep.subr.mxu0 %v360
    %v362 = vand.u32 %v67, 4294901760
    %v363 = vsub.f32 %v67, %v362
    %364 = vmatpush1.msra.mxu0 %v363
    %365 = vmatprep.subr.mxu0 0.0
    %366 = vmatpush1.msra.mxu0 0.0
    %367 = vmatprep.subr.mxu0 0.0
    %368 = vmatpush1.msra.mxu0 0.0
    %369 = vmatprep.subr.mxu0 0.0
    %370 = vmatpush1.msra.mxu0 0.0
    %371 = vmatprep.subr.mxu0 0.0
    %372 = vmatpush1.msra.mxu0 0.0
    %373 = vmatprep.subr.mxu0 0.0
    %374 = vmatpush1.msra.mxu0 0.0
    %375 = vmatprep.subr.mxu0 0.0
    %376 = vmatpush1.msra.mxu0 0.0
    %377 = vmatprep.subr.mxu0 0.0
    %378 = vmatpush1.msra.mxu0 0.0
    %379 = vmatprep.subr.mxu0 0.0
    %380 = vmatpush1.msra.mxu0 0.0
    %381 = vmatprep.subr.mxu0 0.0
    %382 = vmatpush1.msra.mxu0 0.0
    %383 = vmatprep.subr.mxu0 0.0
    %384 = vmatpush1.msra.mxu0 0.0
    %385 = vmatprep.subr.mxu0 0.0
    %386 = vmatpush1.msra.mxu0 0.0
    %387 = vmatprep.subr.mxu0 0.0
    %388 = vmatpush1.msra.mxu0 0.0
    %389 = vmatprep.subr.mxu0 0.0
    %390 = vmatpush1.msra.mxu0 0.0
    %391 = vmatprep.subr.mxu0 0.0
    %392 = vmatpush1.msra.mxu0 0.0
    %393 = vmatprep.subr.mxu0 0.0
    %394 = vmatpush1.msra.mxu0 0.0
    %395 = vmatprep.subr.mxu0 0.0
    %396 = vmatpush1.msra.mxu0 0.0
    %397 = vmatprep.subr.mxu0 0.0
    %398 = vmatpush1.msra.mxu0 0.0
    %399 = vmatprep.subr.mxu0 0.0
    %400 = vmatpush1.msra.mxu0 0.0
    %401 = vmatprep.subr.mxu0 0.0
    %402 = vmatpush1.msra.mxu0 0.0
    %403 = vmatprep.subr.mxu0 0.0
    %404 = vmatpush1.msra.mxu0 0.0
    %405 = vmatprep.subr.mxu0 0.0
    %406 = vmatpush1.msra.mxu0 0.0
    %407 = vmatprep.subr.mxu0 0.0
    %408 = vmatpush1.msra.mxu0 0.0
    %409 = vmatprep.subr.mxu0 0.0
    %410 = vmatpush1.msra.mxu0 0.0
    %411 = vmatprep.subr.mxu0 0.0
    %412 = vmatpush1.msra.mxu0 0.0
    %413 = vmatprep.mubr.f32.mxu0 0.0
    %v414 = vand.u32 %v71, 4294901760
    %v415 = vsub.f32 %v71, %v414
    %416 = vmatmul.mubr.f32.gmra.mrb[0].mxu0 %v415
    %v417 = vpop.f32.mrb[0].mxu0
    %v418 = vadd.f32 %v313, %v417
    %v419 = vpop.f32.mrb[0].mxu0
    %v420 = vadd.f32 %v315, %v419
    %421 = vdwg.mxu0
    %v422 = vand.u32 %v54, 4294901760
    %423 = vmatprep.subr.mxu0 %v422
    %v424 = vand.u32 %v53, 4294901760
    %425 = vmatpush1.msra.mxu0 %v424
    %v426 = vand.u32 %v56, 4294901760
    %427 = vmatprep.subr.mxu0 %v426
    %v428 = vand.u32 %v55, 4294901760
    %429 = vmatpush1.msra.mxu0 %v428
    %v430 = vand.u32 %v58, 4294901760
    %431 = vmatprep.subr.mxu0 %v430
    %v432 = vand.u32 %v57, 4294901760
    %433 = vmatpush1.msra.mxu0 %v432
    %v434 = vand.u32 %v60, 4294901760
    %435 = vmatprep.subr.mxu0 %v434
    %v436 = vand.u32 %v59, 4294901760
    %437 = vmatpush1.msra.mxu0 %v436
    %v438 = vand.u32 %v62, 4294901760
    %439 = vmatprep.subr.mxu0 %v438
    %v440 = vand.u32 %v61, 4294901760
    %441 = vmatpush1.msra.mxu0 %v440
    %v442 = vand.u32 %v64, 4294901760
    %443 = vmatprep.subr.mxu0 %v442
    %v444 = vand.u32 %v63, 4294901760
    %445 = vmatpush1.msra.mxu0 %v444
    %v446 = vand.u32 %v66, 4294901760
    %447 = vmatprep.subr.mxu0 %v446
    %v448 = vand.u32 %v65, 4294901760
    %449 = vmatpush1.msra.mxu0 %v448
    %v450 = vand.u32 %v68, 4294901760
    %451 = vmatprep.subr.mxu0 %v450
    %v452 = vand.u32 %v67, 4294901760
    %453 = vmatpush1.msra.mxu0 %v452
    %454 = vmatprep.subr.mxu0 0.0
    %455 = vmatpush1.msra.mxu0 0.0
    %456 = vmatprep.subr.mxu0 0.0
    %457 = vmatpush1.msra.mxu0 0.0
    %458 = vmatprep.subr.mxu0 0.0
    %459 = vmatpush1.msra.mxu0 0.0
    %460 = vmatprep.subr.mxu0 0.0
    %461 = vmatpush1.msra.mxu0 0.0
    %462 = vmatprep.subr.mxu0 0.0
    %463 = vmatpush1.msra.mxu0 0.0
    %464 = vmatprep.subr.mxu0 0.0
    %465 = vmatpush1.msra.mxu0 0.0
    %466 = vmatprep.subr.mxu0 0.0
    %467 = vmatpush1.msra.mxu0 0.0
    %468 = vmatprep.subr.mxu0 0.0
    %469 = vmatpush1.msra.mxu0 0.0
    %470 = vmatprep.subr.mxu0 0.0
    %471 = vmatpush1.msra.mxu0 0.0
    %472 = vmatprep.subr.mxu0 0.0
    %473 = vmatpush1.msra.mxu0 0.0
    %474 = vmatprep.subr.mxu0 0.0
    %475 = vmatpush1.msra.mxu0 0.0
    %476 = vmatprep.subr.mxu0 0.0
    %477 = vmatpush1.msra.mxu0 0.0
    %478 = vmatprep.subr.mxu0 0.0
    %479 = vmatpush1.msra.mxu0 0.0
    %480 = vmatprep.subr.mxu0 0.0
    %481 = vmatpush1.msra.mxu0 0.0
    %482 = vmatprep.subr.mxu0 0.0
    %483 = vmatpush1.msra.mxu0 0.0
    %484 = vmatprep.subr.mxu0 0.0
    %485 = vmatpush1.msra.mxu0 0.0
    %486 = vmatprep.subr.mxu0 0.0
    %487 = vmatpush1.msra.mxu0 0.0
    %488 = vmatprep.subr.mxu0 0.0
    %489 = vmatpush1.msra.mxu0 0.0
    %490 = vmatprep.subr.mxu0 0.0
    %491 = vmatpush1.msra.mxu0 0.0
    %492 = vmatprep.subr.mxu0 0.0
    %493 = vmatpush1.msra.mxu0 0.0
    %494 = vmatprep.subr.mxu0 0.0
    %495 = vmatpush1.msra.mxu0 0.0
    %496 = vmatprep.subr.mxu0 0.0
    %497 = vmatpush1.msra.mxu0 0.0
    %498 = vmatprep.subr.mxu0 0.0
    %499 = vmatpush1.msra.mxu0 0.0
    %500 = vmatprep.subr.mxu0 0.0
    %501 = vmatpush1.msra.mxu0 0.0
    %502 = vmatprep.mubr.f32.mxu0 0.0
    %v503 = vand.u32 %v71, 4294901760
    %v504 = vsub.f32 %v71, %v503
    %v505 = vand.u32 %v504, 4294901760
    %506 = vmatmul.mubr.f32.gmra.mrb[0].mxu0 %v505
    %v507 = vpop.f32.mrb[0].mxu0
    %v508 = vadd.f32 %v418, %v507
    %v509 = vpop.f32.mrb[0].mxu0
    %v510 = vadd.f32 %v420, %v509
    %511 = vdwg.mxu0
    %v512 = vand.u32 %v54, 4294901760
    %v513 = vsub.f32 %v54, %v512
    %v514 = vand.u32 %v513, 4294901760
    %515 = vmatprep.subr.mxu0 %v514
    %v516 = vand.u32 %v53, 4294901760
    %v517 = vsub.f32 %v53, %v516
    %v518 = vand.u32 %v517, 4294901760
    %519 = vmatpush1.msra.mxu0 %v518
    %v520 = vand.u32 %v56, 4294901760
    %v521 = vsub.f32 %v56, %v520
    %v522 = vand.u32 %v521, 4294901760
    %523 = vmatprep.subr.mxu0 %v522
    %v524 = vand.u32 %v55, 4294901760
    %v525 = vsub.f32 %v55, %v524
    %v526 = vand.u32 %v525, 4294901760
    %527 = vmatpush1.msra.mxu0 %v526
    %v528 = vand.u32 %v58, 4294901760
    %v529 = vsub.f32 %v58, %v528
    %v530 = vand.u32 %v529, 4294901760
    %531 = vmatprep.subr.mxu0 %v530
    %v532 = vand.u32 %v57, 4294901760
    %v533 = vsub.f32 %v57, %v532
    %v534 = vand.u32 %v533, 4294901760
    %535 = vmatpush1.msra.mxu0 %v534
    %v536 = vand.u32 %v60, 4294901760
    %v537 = vsub.f32 %v60, %v536
    %v538 = vand.u32 %v537, 4294901760
    %539 = vmatprep.subr.mxu0 %v538
    %v540 = vand.u32 %v59, 4294901760
    %v541 = vsub.f32 %v59, %v540
    %v542 = vand.u32 %v541, 4294901760
    %543 = vmatpush1.msra.mxu0 %v542
    %v544 = vand.u32 %v62, 4294901760
    %v545 = vsub.f32 %v62, %v544
    %v546 = vand.u32 %v545, 4294901760
    %547 = vmatprep.subr.mxu0 %v546
    %v548 = vand.u32 %v61, 4294901760
    %v549 = vsub.f32 %v61, %v548
    %v550 = vand.u32 %v549, 4294901760
    %551 = vmatpush1.msra.mxu0 %v550
    %v552 = vand.u32 %v64, 4294901760
    %v553 = vsub.f32 %v64, %v552
    %v554 = vand.u32 %v553, 4294901760
    %555 = vmatprep.subr.mxu0 %v554
    %v556 = vand.u32 %v63, 4294901760
    %v557 = vsub.f32 %v63, %v556
    %v558 = vand.u32 %v557, 4294901760
    %559 = vmatpush1.msra.mxu0 %v558
    %v560 = vand.u32 %v66, 4294901760
    %v561 = vsub.f32 %v66, %v560
    %v562 = vand.u32 %v561, 4294901760
    %563 = vmatprep.subr.mxu0 %v562
    %v564 = vand.u32 %v65, 4294901760
    %v565 = vsub.f32 %v65, %v564
    %v566 = vand.u32 %v565, 4294901760
    %567 = vmatpush1.msra.mxu0 %v566
    %v568 = vand.u32 %v68, 4294901760
    %v569 = vsub.f32 %v68, %v568
    %v570 = vand.u32 %v569, 4294901760
    %571 = vmatprep.subr.mxu0 %v570
    %v572 = vand.u32 %v67, 4294901760
    %v573 = vsub.f32 %v67, %v572
    %v574 = vand.u32 %v573, 4294901760
    %575 = vmatpush1.msra.mxu0 %v574
    %576 = vmatprep.subr.mxu0 0.0
    %577 = vmatpush1.msra.mxu0 0.0
    %578 = vmatprep.subr.mxu0 0.0
    %579 = vmatpush1.msra.mxu0 0.0
    %580 = vmatprep.subr.mxu0 0.0
    %581 = vmatpush1.msra.mxu0 0.0
    %582 = vmatprep.subr.mxu0 0.0
    %583 = vmatpush1.msra.mxu0 0.0
    %584 = vmatprep.subr.mxu0 0.0
    %585 = vmatpush1.msra.mxu0 0.0
    %586 = vmatprep.subr.mxu0 0.0
    %587 = vmatpush1.msra.mxu0 0.0
    %588 = vmatprep.subr.mxu0 0.0
    %589 = vmatpush1.msra.mxu0 0.0
    %590 = vmatprep.subr.mxu0 0.0
    %591 = vmatpush1.msra.mxu0 0.0
    %592 = vmatprep.subr.mxu0 0.0
    %593 = vmatpush1.msra.mxu0 0.0
    %594 = vmatprep.subr.mxu0 0.0
    %595 = vmatpush1.msra.mxu0 0.0
    %596 = vmatprep.subr.mxu0 0.0
    %597 = vmatpush1.msra.mxu0 0.0
    %598 = vmatprep.subr.mxu0 0.0
    %599 = vmatpush1.msra.mxu0 0.0
    %600 = vmatprep.subr.mxu0 0.0
    %601 = vmatpush1.msra.mxu0 0.0
    %602 = vmatprep.subr.mxu0 0.0
    %603 = vmatpush1.msra.mxu0 0.0
    %604 = vmatprep.subr.mxu0 0.0
    %605 = vmatpush1.msra.mxu0 0.0
    %606 = vmatprep.subr.mxu0 0.0
    %607 = vmatpush1.msra.mxu0 0.0
    %608 = vmatprep.subr.mxu0 0.0
    %609 = vmatpush1.msra.mxu0 0.0
    %610 = vmatprep.subr.mxu0 0.0
    %611 = vmatpush1.msra.mxu0 0.0
    %612 = vmatprep.subr.mxu0 0.0
    %613 = vmatpush1.msra.mxu0 0.0
    %614 = vmatprep.subr.mxu0 0.0
    %615 = vmatpush1.msra.mxu0 0.0
    %616 = vmatprep.subr.mxu0 0.0
    %617 = vmatpush1.msra.mxu0 0.0
    %618 = vmatprep.subr.mxu0 0.0
    %619 = vmatpush1.msra.mxu0 0.0
    %620 = vmatprep.subr.mxu0 0.0
    %621 = vmatpush1.msra.mxu0 0.0
    %622 = vmatprep.subr.mxu0 0.0
    %623 = vmatpush1.msra.mxu0 0.0
    %624 = vmatprep.mubr.f32.mxu0 0.0
    %v625 = vand.u32 %v71, 4294901760
    %626 = vmatmul.mubr.f32.gmra.mrb[0].mxu0 %v625
    %v627 = vpop.f32.mrb[0].mxu0
    %v628 = vadd.f32 %v508, %v627
    %v629 = vpop.f32.mrb[0].mxu0
    %v630 = vadd.f32 %v510, %v629
    %631 = vdwg.mxu0
    %v632 = vand.u32 %v54, 4294901760
    %633 = vmatprep.subr.mxu0 %v632
    %v634 = vand.u32 %v53, 4294901760
    %635 = vmatpush1.msra.mxu0 %v634
    %v636 = vand.u32 %v56, 4294901760
    %637 = vmatprep.subr.mxu0 %v636
    %v638 = vand.u32 %v55, 4294901760
    %639 = vmatpush1.msra.mxu0 %v638
    %v640 = vand.u32 %v58, 4294901760
    %641 = vmatprep.subr.mxu0 %v640
    %v642 = vand.u32 %v57, 4294901760
    %643 = vmatpush1.msra.mxu0 %v642
    %v644 = vand.u32 %v60, 4294901760
    %645 = vmatprep.subr.mxu0 %v644
    %v646 = vand.u32 %v59, 4294901760
    %647 = vmatpush1.msra.mxu0 %v646
    %v648 = vand.u32 %v62, 4294901760
    %649 = vmatprep.subr.mxu0 %v648
    %v650 = vand.u32 %v61, 4294901760
    %651 = vmatpush1.msra.mxu0 %v650
    %v652 = vand.u32 %v64, 4294901760
    %653 = vmatprep.subr.mxu0 %v652
    %v654 = vand.u32 %v63, 4294901760
    %655 = vmatpush1.msra.mxu0 %v654
    %v656 = vand.u32 %v66, 4294901760
    %657 = vmatprep.subr.mxu0 %v656
    %v658 = vand.u32 %v65, 4294901760
    %659 = vmatpush1.msra.mxu0 %v658
    %v660 = vand.u32 %v68, 4294901760
    %661 = vmatprep.subr.mxu0 %v660
    %v662 = vand.u32 %v67, 4294901760
    %663 = vmatpush1.msra.mxu0 %v662
    %664 = vmatprep.subr.mxu0 0.0
    %665 = vmatpush1.msra.mxu0 0.0
    %666 = vmatprep.subr.mxu0 0.0
    %667 = vmatpush1.msra.mxu0 0.0
    %668 = vmatprep.subr.mxu0 0.0
    %669 = vmatpush1.msra.mxu0 0.0
    %670 = vmatprep.subr.mxu0 0.0
    %671 = vmatpush1.msra.mxu0 0.0
    %672 = vmatprep.subr.mxu0 0.0
    %673 = vmatpush1.msra.mxu0 0.0
    %674 = vmatprep.subr.mxu0 0.0
    %675 = vmatpush1.msra.mxu0 0.0
    %676 = vmatprep.subr.mxu0 0.0
    %677 = vmatpush1.msra.mxu0 0.0
    %678 = vmatprep.subr.mxu0 0.0
    %679 = vmatpush1.msra.mxu0 0.0
    %680 = vmatprep.subr.mxu0 0.0
    %681 = vmatpush1.msra.mxu0 0.0
    %682 = vmatprep.subr.mxu0 0.0
    %683 = vmatpush1.msra.mxu0 0.0
    %684 = vmatprep.subr.mxu0 0.0
    %685 = vmatpush1.msra.mxu0 0.0
    %686 = vmatprep.subr.mxu0 0.0
    %687 = vmatpush1.msra.mxu0 0.0
    %688 = vmatprep.subr.mxu0 0.0
    %689 = vmatpush1.msra.mxu0 0.0
    %690 = vmatprep.subr.mxu0 0.0
    %691 = vmatpush1.msra.mxu0 0.0
    %692 = vmatprep.subr.mxu0 0.0
    %693 = vmatpush1.msra.mxu0 0.0
    %694 = vmatprep.subr.mxu0 0.0
    %695 = vmatpush1.msra.mxu0 0.0
    %696 = vmatprep.subr.mxu0 0.0
    %697 = vmatpush1.msra.mxu0 0.0
    %698 = vmatprep.subr.mxu0 0.0
    %699 = vmatpush1.msra.mxu0 0.0
    %700 = vmatprep.subr.mxu0 0.0
    %701 = vmatpush1.msra.mxu0 0.0
    %702 = vmatprep.subr.mxu0 0.0
    %703 = vmatpush1.msra.mxu0 0.0
    %704 = vmatprep.subr.mxu0 0.0
    %705 = vmatpush1.msra.mxu0 0.0
    %706 = vmatprep.subr.mxu0 0.0
    %707 = vmatpush1.msra.mxu0 0.0
    %708 = vmatprep.subr.mxu0 0.0
    %709 = vmatpush1.msra.mxu0 0.0
    %710 = vmatprep.subr.mxu0 0.0
    %711 = vmatpush1.msra.mxu0 0.0
    %712 = vmatprep.mubr.f32.mxu0 0.0
    %v713 = vand.u32 %v71, 4294901760
    %714 = vmatmul.mubr.f32.gmra.mrb[0].mxu0 %v713
    %v715 = vpop.f32.mrb[0].mxu0
    %v716 = vadd.f32 %v628, %v715
    %v717 = vpop.f32.mrb[0].mxu0
    %v718 = vadd.f32 %v630, %v717
    %719 = vdwg.mxu0
    %v720 = vld [vmem:[#allocation7] sm:$0xff]
    %v721 = vld [vmem:[#allocation7 + $0x8] sm:$0xff]
    %v722 = vsub.f32 %v716, %v720
    %v723 = vsub.f32 %v718, %v721
    %v724 = vmul.f32 %v722, %v722
    %v725 = vmul.f32 %v723, %v723
    %v726 = vrot.slane %v724, 4
    %v727 = vadd.f32 %v724, %v726
    %v728 = vrot.slane %v727, 2
    %v729 = vadd.f32 %v727, %v728
    %v730 = vrot.slane %v729, 1
    %v731 = vadd.f32 %v729, %v730
    %v732 = vrot.slane %v725, 4
    %v733 = vadd.f32 %v725, %v732
    %v734 = vrot.slane %v733, 2
    %v735 = vadd.f32 %v733, %v734
    %v736 = vrot.slane %v735, 1
    %v737 = vadd.f32 %v735, %v736
    %v740 = vcombine.low %v731, %v737
    %v742 = vunpack.c.l.s4 1966171168
    %v743 = vunpack.c.0.s8 %v742
    %v744 = vlaneseq
    %v745 = vshrl.u32 %v744, 7
    %v746 = vsub.s32 %v743, %v745
    %v747 = vrot.slane %v740, %v746
    %v749 = vunpack.c.l.s4 1966171168
    %v750 = vunpack.c.0.s8 %v749
    %v751 = vlaneseq
    %v752 = vshrl.u32 %v751, 7
    %v753 = vsub.s32 %v750, %v752
    %v754 = vrot.slane %v747, %v753
    %v756 = vlaneseq
    %vm757 = vcmp.ge.s32.totalorder %v756, 0
    %vm758 = vcmp.lt.s32.totalorder %v756, 256
    %vm759 = vmand %vm757, %vm758
    %760 = vst.msk [vmem:[#allocation8] sm:$0x3] %vm759, %v754
    // Predicated region
    $region26: #{tpu_custom_call.1} parent=1 // pred_check
      _
    $region27: #{tpu_custom_call.1} parent=1 // pred_check_branch
      %762 = sbr.rel (0) target = $region29
    $region28: #{tpu_custom_call.1} parent=1 // pred_region
      %s764 = ssub.s32 32, 32
      %765 = vsyncadd [#allocation4], %s764
      %s767 = sshll.u32 [#allocation8], 4
      %s768 = int_to_ptr.vmem [resolvable:$true] %s767
      %770 = dma.vmem_to_hbm [thread:$0]  %s768, 32, %s3, [#allocation4]
    $region29: #{tpu_custom_call.1} parent=1 // pred_fallthru
      _
    // Predicated region
    $region30: #{tpu_custom_call.1} parent=1 // pred_check
      _
    $region31: #{tpu_custom_call.1} parent=1 // pred_check_branch
      %772 = sbr.rel (0) target = $region33
    $region32: #{tpu_custom_call.1} parent=1 // pred_region
      %773 = dma.done [#allocation4], 32
    $region33: #{tpu_custom_call.1} parent=1 // pred_fallthru
      _
    %774 = vsyncpa [#allocation3], 1
    %775 = vsyncpa [#allocation6], 1
    %776 = vsyncpa [#allocation4], 1

</llo_original>
